<compile_context>
chip_gen: v7x
topology: tpu7x:2x2x1
jax: 0.10.0
libtpu: 0.0.40
codegen_flags: <defaults>
</compile_context>

<pallas_src>
import jax
import jax.numpy as jnp
from jax.experimental import pallas as pl
from jax.experimental.pallas import tpu as pltpu


def _dense_vpu(h, w_ref, b_ref, relu):
    """One linear layer on the VPU in (features, batch) layout.

    h:      (in_f, TILE_B) f32 value already in vregs
    w_ref:  (out_f, in_f)  VMEM ref (PyTorch nn.Linear layout)
    b_ref:  (out_f, 1)     VMEM ref
    returns (out_f, TILE_B) f32
    """
    w = w_ref[...].astype(jnp.float32)
    in_f = w.shape[1]
    # Broadcast-FMA: (out_f, 1) weight column x (1, TILE_B) input row.
    acc = w[:, 0:1] * h[0:1, :]
    for k in range(1, in_f):  # tiny static trip count -> fully unrolled
        acc = acc + w[:, k : k + 1] * h[k : k + 1, :]
    acc = acc + b_ref[...].astype(jnp.float32)  # (out_f, 1) lane-broadcast
    if relu:
        acc = jnp.maximum(acc, 0.0)
    return acc


def mlp_kernel(x_ref, w1_ref, b1_ref, w2_ref, b2_ref, w3_ref, b3_ref, o_ref):
    x = x_ref[...].astype(jnp.float32)           # (4,  TILE_B)
    h1 = _dense_vpu(x, w1_ref, b1_ref, relu=True)    # (16, TILE_B)
    h2 = _dense_vpu(h1, w2_ref, b2_ref, relu=True)   # (8,  TILE_B)
    out = _dense_vpu(h2, w3_ref, b3_ref, relu=False)  # (3,  TILE_B)
    o_ref[...] = out.astype(o_ref.dtype)


def mlp_forward(x, params, *, tile_b=256):
    """x: (B, 4) -> (B, 3). Internally runs in a transposed (features, B) layout."""
    w1, b1, w2, b2, w3, b3 = params
    B, in_f = x.shape
    out_f = w3.shape[0]

    n_tiles = pl.cdiv(B, tile_b)
    b_pad = n_tiles * tile_b

    # Layout plumbing in the wrapper: pad batch to a tile multiple and
    # transpose so batch is the (lane) minor axis.
    x_t = jnp.zeros((in_f, b_pad), x.dtype).at[:, :B].set(x.T)

    out_t = pl.pallas_call(
        mlp_kernel,
        out_shape=jax.ShapeDtypeStruct((out_f, b_pad), x.dtype),
        grid=(n_tiles,),
        in_specs=[
            # Batch-tiled activations: one (4, TILE_B) slab per grid step.
            pl.BlockSpec((in_f, tile_b), lambda i: (0, i)),
            # Weights / biases: full-array blocks, constant index_map ->
            # fetched once and kept resident in VMEM across the grid.
            pl.BlockSpec(w1.shape, lambda i: (0, 0)),
            pl.BlockSpec(b1.shape, lambda i: (0, 0)),
            pl.BlockSpec(w2.shape, lambda i: (0, 0)),
            pl.BlockSpec(b2.shape, lambda i: (0, 0)),
            pl.BlockSpec(w3.shape, lambda i: (0, 0)),
            pl.BlockSpec(b3.shape, lambda i: (0, 0)),
        ],
        out_specs=pl.BlockSpec((out_f, tile_b), lambda i: (0, i)),
        compiler_params=pltpu.CompilerParams(
            dimension_semantics=("parallel",),  # split batch tiles across TCs (v7x)
        ),
    )(x_t, w1, b1, w2, b2, w3, b3)

    # Back to the user-facing (B, 3) layout, dropping the batch padding.
    return out_t[:, :B].T


def init_params(key):
    """Deterministic init mirroring nn.Linear: W is (out, in), b is (out, 1)."""
    def linear_init(k, fan_in, fan_out):
        kw, kb = jax.random.split(k)
        bound = 1.0 / jnp.sqrt(jnp.float32(fan_in))
        w = jax.random.uniform(kw, (fan_out, fan_in), jnp.float32, -bound, bound)
        b = jax.random.uniform(kb, (fan_out, 1), jnp.float32, -bound, bound)
        return w, b

    k1, k2, k3 = jax.random.split(key, 3)
    w1, b1 = linear_init(k1, 4, 16)
    w2, b2 = linear_init(k2, 16, 8)
    w3, b3 = linear_init(k3, 8, 3)
    return (w1, b1, w2, b2, w3, b3)


def reference_forward(x, params):
    """Pure-JAX reference of the same forward pass for a correctness check."""
    w1, b1, w2, b2, w3, b3 = params
    h1 = jnp.maximum(x @ w1.T + b1[:, 0], 0.0)
    h2 = jnp.maximum(h1 @ w2.T + b2[:, 0], 0.0)
    return h2 @ w3.T + b3[:, 0]


if __name__ == "__main__":
    key = jax.random.PRNGKey(0)
    kx, kp = jax.random.split(key)

    # Batched iris-style inference: 1000 samples x 4 features (not a tile
    # multiple, to exercise the padding path).  For truly tiny batches (B~8)
    # a plain jnp fusion is preferable to any kernel launch.
    B = 1000
    x = jax.random.normal(kx, (B, 4), jnp.float32)
    params = init_params(kp)

    out = jax.block_until_ready(mlp_forward(x, params))

    ref = reference_forward(x, params)
    assert out.shape == (B, 3), out.shape
    assert jnp.allclose(out, ref, atol=1e-4, rtol=1e-5), "mismatch vs JAX reference"

    print("KERNEL_OK")
</pallas_src>

<mosaic_0001>
module attributes {stable_mosaic.version = 11 : i64} {
  func.func @mlp_kernel(%arg0: i32, %arg1: memref<4x256xf32, #tpu.memory_space<vmem>>, %arg2: memref<16x4xf32, #tpu.memory_space<vmem>>, %arg3: memref<16x1xf32, #tpu.memory_space<vmem>>, %arg4: memref<8x16xf32, #tpu.memory_space<vmem>>, %arg5: memref<8x1xf32, #tpu.memory_space<vmem>>, %arg6: memref<3x8xf32, #tpu.memory_space<vmem>>, %arg7: memref<3x1xf32, #tpu.memory_space<vmem>>, %arg8: memref<3x256xf32, #tpu.memory_space<vmem>>) attributes {dimension_semantics = [#tpu.dimension_semantics<parallel>], iteration_bounds = array<i64: 4>, scalar_prefetch = 0 : i64, scratch_operands = 0 : i64, tpu.core_type = #tpu.core_type<tc>, window_params = [{transform_indices = @transform_0, window_bounds = array<i64: 4, 256>}, {pipeline_mode = #tpu.pipeline_mode<synchronous>, transform_indices = @transform_1, window_bounds = array<i64: 16, 4>}, {pipeline_mode = #tpu.pipeline_mode<synchronous>, transform_indices = @transform_2, window_bounds = array<i64: 16, 1>}, {pipeline_mode = #tpu.pipeline_mode<synchronous>, transform_indices = @transform_3, window_bounds = array<i64: 8, 16>}, {pipeline_mode = #tpu.pipeline_mode<synchronous>, transform_indices = @transform_4, window_bounds = array<i64: 8, 1>}, {pipeline_mode = #tpu.pipeline_mode<synchronous>, transform_indices = @transform_5, window_bounds = array<i64: 3, 8>}, {pipeline_mode = #tpu.pipeline_mode<synchronous>, transform_indices = @transform_6, window_bounds = array<i64: 3, 1>}, {transform_indices = @transform_7, window_bounds = array<i64: 3, 256>}]} {
    %c0 = arith.constant 0 : index
    %c0_0 = arith.constant 0 : index
    %0 = vector.load %arg1[%c0, %c0_0] : memref<4x256xf32, #tpu.memory_space<vmem>>, vector<4x256xf32>
    %c0_1 = arith.constant 0 : index
    %c0_2 = arith.constant 0 : index
    %1 = vector.load %arg2[%c0_1, %c0_2] : memref<16x4xf32, #tpu.memory_space<vmem>>, vector<16x4xf32>
    %2 = vector.extract_strided_slice %1 {offsets = [0, 0], sizes = [16, 1], strides = [1, 1]} : vector<16x4xf32> to vector<16x1xf32>
    %3 = vector.extract_strided_slice %0 {offsets = [0, 0], sizes = [1, 256], strides = [1, 1]} : vector<4x256xf32> to vector<1x256xf32>
    %4 = vector.broadcast %2 : vector<16x1xf32> to vector<16x256xf32>
    %5 = vector.broadcast %3 : vector<1x256xf32> to vector<16x256xf32>
    %6 = arith.mulf %4, %5 : vector<16x256xf32>
    %7 = vector.extract_strided_slice %1 {offsets = [0, 1], sizes = [16, 1], strides = [1, 1]} : vector<16x4xf32> to vector<16x1xf32>
    %8 = vector.extract_strided_slice %0 {offsets = [1, 0], sizes = [1, 256], strides = [1, 1]} : vector<4x256xf32> to vector<1x256xf32>
    %9 = vector.broadcast %7 : vector<16x1xf32> to vector<16x256xf32>
    %10 = vector.broadcast %8 : vector<1x256xf32> to vector<16x256xf32>
    %11 = arith.mulf %9, %10 : vector<16x256xf32>
    %12 = arith.addf %6, %11 : vector<16x256xf32>
    %13 = vector.extract_strided_slice %1 {offsets = [0, 2], sizes = [16, 1], strides = [1, 1]} : vector<16x4xf32> to vector<16x1xf32>
    %14 = vector.extract_strided_slice %0 {offsets = [2, 0], sizes = [1, 256], strides = [1, 1]} : vector<4x256xf32> to vector<1x256xf32>
    %15 = vector.broadcast %13 : vector<16x1xf32> to vector<16x256xf32>
    %16 = vector.broadcast %14 : vector<1x256xf32> to vector<16x256xf32>
    %17 = arith.mulf %15, %16 : vector<16x256xf32>
    %18 = arith.addf %12, %17 : vector<16x256xf32>
    %19 = vector.extract_strided_slice %1 {offsets = [0, 3], sizes = [16, 1], strides = [1, 1]} : vector<16x4xf32> to vector<16x1xf32>
    %20 = vector.extract_strided_slice %0 {offsets = [3, 0], sizes = [1, 256], strides = [1, 1]} : vector<4x256xf32> to vector<1x256xf32>
    %21 = vector.broadcast %19 : vector<16x1xf32> to vector<16x256xf32>
    %22 = vector.broadcast %20 : vector<1x256xf32> to vector<16x256xf32>
    %23 = arith.mulf %21, %22 : vector<16x256xf32>
    %24 = arith.addf %18, %23 : vector<16x256xf32>
    %c0_3 = arith.constant 0 : index
    %c0_4 = arith.constant 0 : index
    %25 = vector.load %arg3[%c0_3, %c0_4] : memref<16x1xf32, #tpu.memory_space<vmem>>, vector<16x1xf32>
    %26 = vector.broadcast %25 : vector<16x1xf32> to vector<16x256xf32>
    %27 = arith.addf %24, %26 : vector<16x256xf32>
    %cst = arith.constant 0.000000e+00 : f32
    %28 = vector.broadcast %cst : f32 to vector<16x256xf32>
    %29 = arith.maximumf %27, %28 : vector<16x256xf32>
    %c0_5 = arith.constant 0 : index
    %c0_6 = arith.constant 0 : index
    %30 = vector.load %arg4[%c0_5, %c0_6] : memref<8x16xf32, #tpu.memory_space<vmem>>, vector<8x16xf32>
    %31 = vector.extract_strided_slice %30 {offsets = [0, 0], sizes = [8, 1], strides = [1, 1]} : vector<8x16xf32> to vector<8x1xf32>
    %32 = vector.extract_strided_slice %29 {offsets = [0, 0], sizes = [1, 256], strides = [1, 1]} : vector<16x256xf32> to vector<1x256xf32>
    %33 = vector.broadcast %31 : vector<8x1xf32> to vector<8x256xf32>
    %34 = vector.broadcast %32 : vector<1x256xf32> to vector<8x256xf32>
    %35 = arith.mulf %33, %34 : vector<8x256xf32>
    %36 = vector.extract_strided_slice %30 {offsets = [0, 1], sizes = [8, 1], strides = [1, 1]} : vector<8x16xf32> to vector<8x1xf32>
    %37 = vector.extract_strided_slice %29 {offsets = [1, 0], sizes = [1, 256], strides = [1, 1]} : vector<16x256xf32> to vector<1x256xf32>
    %38 = vector.broadcast %36 : vector<8x1xf32> to vector<8x256xf32>
    %39 = vector.broadcast %37 : vector<1x256xf32> to vector<8x256xf32>
    %40 = arith.mulf %38, %39 : vector<8x256xf32>
    %41 = arith.addf %35, %40 : vector<8x256xf32>
    %42 = vector.extract_strided_slice %30 {offsets = [0, 2], sizes = [8, 1], strides = [1, 1]} : vector<8x16xf32> to vector<8x1xf32>
    %43 = vector.extract_strided_slice %29 {offsets = [2, 0], sizes = [1, 256], strides = [1, 1]} : vector<16x256xf32> to vector<1x256xf32>
    %44 = vector.broadcast %42 : vector<8x1xf32> to vector<8x256xf32>
    %45 = vector.broadcast %43 : vector<1x256xf32> to vector<8x256xf32>
    %46 = arith.mulf %44, %45 : vector<8x256xf32>
    %47 = arith.addf %41, %46 : vector<8x256xf32>
    %48 = vector.extract_strided_slice %30 {offsets = [0, 3], sizes = [8, 1], strides = [1, 1]} : vector<8x16xf32> to vector<8x1xf32>
    %49 = vector.extract_strided_slice %29 {offsets = [3, 0], sizes = [1, 256], strides = [1, 1]} : vector<16x256xf32> to vector<1x256xf32>
    %50 = vector.broadcast %48 : vector<8x1xf32> to vector<8x256xf32>
    %51 = vector.broadcast %49 : vector<1x256xf32> to vector<8x256xf32>
    %52 = arith.mulf %50, %51 : vector<8x256xf32>
    %53 = arith.addf %47, %52 : vector<8x256xf32>
    %54 = vector.extract_strided_slice %30 {offsets = [0, 4], sizes = [8, 1], strides = [1, 1]} : vector<8x16xf32> to vector<8x1xf32>
    %55 = vector.extract_strided_slice %29 {offsets = [4, 0], sizes = [1, 256], strides = [1, 1]} : vector<16x256xf32> to vector<1x256xf32>
    %56 = vector.broadcast %54 : vector<8x1xf32> to vector<8x256xf32>
    %57 = vector.broadcast %55 : vector<1x256xf32> to vector<8x256xf32>
    %58 = arith.mulf %56, %57 : vector<8x256xf32>
    %59 = arith.addf %53, %58 : vector<8x256xf32>
    %60 = vector.extract_strided_slice %30 {offsets = [0, 5], sizes = [8, 1], strides = [1, 1]} : vector<8x16xf32> to vector<8x1xf32>
    %61 = vector.extract_strided_slice %29 {offsets = [5, 0], sizes = [1, 256], strides = [1, 1]} : vector<16x256xf32> to vector<1x256xf32>
    %62 = vector.broadcast %60 : vector<8x1xf32> to vector<8x256xf32>
    %63 = vector.broadcast %61 : vector<1x256xf32> to vector<8x256xf32>
    %64 = arith.mulf %62, %63 : vector<8x256xf32>
    %65 = arith.addf %59, %64 : vector<8x256xf32>
    %66 = vector.extract_strided_slice %30 {offsets = [0, 6], sizes = [8, 1], strides = [1, 1]} : vector<8x16xf32> to vector<8x1xf32>
    %67 = vector.extract_strided_slice %29 {offsets = [6, 0], sizes = [1, 256], strides = [1, 1]} : vector<16x256xf32> to vector<1x256xf32>
    %68 = vector.broadcast %66 : vector<8x1xf32> to vector<8x256xf32>
    %69 = vector.broadcast %67 : vector<1x256xf32> to vector<8x256xf32>
    %70 = arith.mulf %68, %69 : vector<8x256xf32>
    %71 = arith.addf %65, %70 : vector<8x256xf32>
    %72 = vector.extract_strided_slice %30 {offsets = [0, 7], sizes = [8, 1], strides = [1, 1]} : vector<8x16xf32> to vector<8x1xf32>
    %73 = vector.extract_strided_slice %29 {offsets = [7, 0], sizes = [1, 256], strides = [1, 1]} : vector<16x256xf32> to vector<1x256xf32>
    %74 = vector.broadcast %72 : vector<8x1xf32> to vector<8x256xf32>
    %75 = vector.broadcast %73 : vector<1x256xf32> to vector<8x256xf32>
    %76 = arith.mulf %74, %75 : vector<8x256xf32>
    %77 = arith.addf %71, %76 : vector<8x256xf32>
    %78 = vector.extract_strided_slice %30 {offsets = [0, 8], sizes = [8, 1], strides = [1, 1]} : vector<8x16xf32> to vector<8x1xf32>
    %79 = vector.extract_strided_slice %29 {offsets = [8, 0], sizes = [1, 256], strides = [1, 1]} : vector<16x256xf32> to vector<1x256xf32>
    %80 = vector.broadcast %78 : vector<8x1xf32> to vector<8x256xf32>
    %81 = vector.broadcast %79 : vector<1x256xf32> to vector<8x256xf32>
    %82 = arith.mulf %80, %81 : vector<8x256xf32>
    %83 = arith.addf %77, %82 : vector<8x256xf32>
    %84 = vector.extract_strided_slice %30 {offsets = [0, 9], sizes = [8, 1], strides = [1, 1]} : vector<8x16xf32> to vector<8x1xf32>
    %85 = vector.extract_strided_slice %29 {offsets = [9, 0], sizes = [1, 256], strides = [1, 1]} : vector<16x256xf32> to vector<1x256xf32>
    %86 = vector.broadcast %84 : vector<8x1xf32> to vector<8x256xf32>
    %87 = vector.broadcast %85 : vector<1x256xf32> to vector<8x256xf32>
    %88 = arith.mulf %86, %87 : vector<8x256xf32>
    %89 = arith.addf %83, %88 : vector<8x256xf32>
    %90 = vector.extract_strided_slice %30 {offsets = [0, 10], sizes = [8, 1], strides = [1, 1]} : vector<8x16xf32> to vector<8x1xf32>
    %91 = vector.extract_strided_slice %29 {offsets = [10, 0], sizes = [1, 256], strides = [1, 1]} : vector<16x256xf32> to vector<1x256xf32>
    %92 = vector.broadcast %90 : vector<8x1xf32> to vector<8x256xf32>
    %93 = vector.broadcast %91 : vector<1x256xf32> to vector<8x256xf32>
    %94 = arith.mulf %92, %93 : vector<8x256xf32>
    %95 = arith.addf %89, %94 : vector<8x256xf32>
    %96 = vector.extract_strided_slice %30 {offsets = [0, 11], sizes = [8, 1], strides = [1, 1]} : vector<8x16xf32> to vector<8x1xf32>
    %97 = vector.extract_strided_slice %29 {offsets = [11, 0], sizes = [1, 256], strides = [1, 1]} : vector<16x256xf32> to vector<1x256xf32>
    %98 = vector.broadcast %96 : vector<8x1xf32> to vector<8x256xf32>
    %99 = vector.broadcast %97 : vector<1x256xf32> to vector<8x256xf32>
    %100 = arith.mulf %98, %99 : vector<8x256xf32>
    %101 = arith.addf %95, %100 : vector<8x256xf32>
    %102 = vector.extract_strided_slice %30 {offsets = [0, 12], sizes = [8, 1], strides = [1, 1]} : vector<8x16xf32> to vector<8x1xf32>
    %103 = vector.extract_strided_slice %29 {offsets = [12, 0], sizes = [1, 256], strides = [1, 1]} : vector<16x256xf32> to vector<1x256xf32>
    %104 = vector.broadcast %102 : vector<8x1xf32> to vector<8x256xf32>
    %105 = vector.broadcast %103 : vector<1x256xf32> to vector<8x256xf32>
    %106 = arith.mulf %104, %105 : vector<8x256xf32>
    %107 = arith.addf %101, %106 : vector<8x256xf32>
    %108 = vector.extract_strided_slice %30 {offsets = [0, 13], sizes = [8, 1], strides = [1, 1]} : vector<8x16xf32> to vector<8x1xf32>
    %109 = vector.extract_strided_slice %29 {offsets = [13, 0], sizes = [1, 256], strides = [1, 1]} : vector<16x256xf32> to vector<1x256xf32>
    %110 = vector.broadcast %108 : vector<8x1xf32> to vector<8x256xf32>
    %111 = vector.broadcast %109 : vector<1x256xf32> to vector<8x256xf32>
    %112 = arith.mulf %110, %111 : vector<8x256xf32>
    %113 = arith.addf %107, %112 : vector<8x256xf32>
    %114 = vector.extract_strided_slice %30 {offsets = [0, 14], sizes = [8, 1], strides = [1, 1]} : vector<8x16xf32> to vector<8x1xf32>
    %115 = vector.extract_strided_slice %29 {offsets = [14, 0], sizes = [1, 256], strides = [1, 1]} : vector<16x256xf32> to vector<1x256xf32>
    %116 = vector.broadcast %114 : vector<8x1xf32> to vector<8x256xf32>
    %117 = vector.broadcast %115 : vector<1x256xf32> to vector<8x256xf32>
    %118 = arith.mulf %116, %117 : vector<8x256xf32>
    %119 = arith.addf %113, %118 : vector<8x256xf32>
    %120 = vector.extract_strided_slice %30 {offsets = [0, 15], sizes = [8, 1], strides = [1, 1]} : vector<8x16xf32> to vector<8x1xf32>
    %121 = vector.extract_strided_slice %29 {offsets = [15, 0], sizes = [1, 256], strides = [1, 1]} : vector<16x256xf32> to vector<1x256xf32>
    %122 = vector.broadcast %120 : vector<8x1xf32> to vector<8x256xf32>
    %123 = vector.broadcast %121 : vector<1x256xf32> to vector<8x256xf32>
    %124 = arith.mulf %122, %123 : vector<8x256xf32>
    %125 = arith.addf %119, %124 : vector<8x256xf32>
    %c0_7 = arith.constant 0 : index
    %c0_8 = arith.constant 0 : index
    %126 = vector.load %arg5[%c0_7, %c0_8] : memref<8x1xf32, #tpu.memory_space<vmem>>, vector<8x1xf32>
    %127 = vector.broadcast %126 : vector<8x1xf32> to vector<8x256xf32>
    %128 = arith.addf %125, %127 : vector<8x256xf32>
    %cst_9 = arith.constant 0.000000e+00 : f32
    %129 = vector.broadcast %cst_9 : f32 to vector<8x256xf32>
    %130 = arith.maximumf %128, %129 : vector<8x256xf32>
    %c0_10 = arith.constant 0 : index
    %c0_11 = arith.constant 0 : index
    %131 = vector.load %arg6[%c0_10, %c0_11] : memref<3x8xf32, #tpu.memory_space<vmem>>, vector<3x8xf32>
    %132 = vector.extract_strided_slice %131 {offsets = [0, 0], sizes = [3, 1], strides = [1, 1]} : vector<3x8xf32> to vector<3x1xf32>
    %133 = vector.extract_strided_slice %130 {offsets = [0, 0], sizes = [1, 256], strides = [1, 1]} : vector<8x256xf32> to vector<1x256xf32>
    %134 = vector.broadcast %132 : vector<3x1xf32> to vector<3x256xf32>
    %135 = vector.broadcast %133 : vector<1x256xf32> to vector<3x256xf32>
    %136 = arith.mulf %134, %135 : vector<3x256xf32>
    %137 = vector.extract_strided_slice %131 {offsets = [0, 1], sizes = [3, 1], strides = [1, 1]} : vector<3x8xf32> to vector<3x1xf32>
    %138 = vector.extract_strided_slice %130 {offsets = [1, 0], sizes = [1, 256], strides = [1, 1]} : vector<8x256xf32> to vector<1x256xf32>
    %139 = vector.broadcast %137 : vector<3x1xf32> to vector<3x256xf32>
    %140 = vector.broadcast %138 : vector<1x256xf32> to vector<3x256xf32>
    %141 = arith.mulf %139, %140 : vector<3x256xf32>
    %142 = arith.addf %136, %141 : vector<3x256xf32>
    %143 = vector.extract_strided_slice %131 {offsets = [0, 2], sizes = [3, 1], strides = [1, 1]} : vector<3x8xf32> to vector<3x1xf32>
    %144 = vector.extract_strided_slice %130 {offsets = [2, 0], sizes = [1, 256], strides = [1, 1]} : vector<8x256xf32> to vector<1x256xf32>
    %145 = vector.broadcast %143 : vector<3x1xf32> to vector<3x256xf32>
    %146 = vector.broadcast %144 : vector<1x256xf32> to vector<3x256xf32>
    %147 = arith.mulf %145, %146 : vector<3x256xf32>
    %148 = arith.addf %142, %147 : vector<3x256xf32>
    %149 = vector.extract_strided_slice %131 {offsets = [0, 3], sizes = [3, 1], strides = [1, 1]} : vector<3x8xf32> to vector<3x1xf32>
    %150 = vector.extract_strided_slice %130 {offsets = [3, 0], sizes = [1, 256], strides = [1, 1]} : vector<8x256xf32> to vector<1x256xf32>
    %151 = vector.broadcast %149 : vector<3x1xf32> to vector<3x256xf32>
    %152 = vector.broadcast %150 : vector<1x256xf32> to vector<3x256xf32>
    %153 = arith.mulf %151, %152 : vector<3x256xf32>
    %154 = arith.addf %148, %153 : vector<3x256xf32>
    %155 = vector.extract_strided_slice %131 {offsets = [0, 4], sizes = [3, 1], strides = [1, 1]} : vector<3x8xf32> to vector<3x1xf32>
    %156 = vector.extract_strided_slice %130 {offsets = [4, 0], sizes = [1, 256], strides = [1, 1]} : vector<8x256xf32> to vector<1x256xf32>
    %157 = vector.broadcast %155 : vector<3x1xf32> to vector<3x256xf32>
    %158 = vector.broadcast %156 : vector<1x256xf32> to vector<3x256xf32>
    %159 = arith.mulf %157, %158 : vector<3x256xf32>
    %160 = arith.addf %154, %159 : vector<3x256xf32>
    %161 = vector.extract_strided_slice %131 {offsets = [0, 5], sizes = [3, 1], strides = [1, 1]} : vector<3x8xf32> to vector<3x1xf32>
    %162 = vector.extract_strided_slice %130 {offsets = [5, 0], sizes = [1, 256], strides = [1, 1]} : vector<8x256xf32> to vector<1x256xf32>
    %163 = vector.broadcast %161 : vector<3x1xf32> to vector<3x256xf32>
    %164 = vector.broadcast %162 : vector<1x256xf32> to vector<3x256xf32>
    %165 = arith.mulf %163, %164 : vector<3x256xf32>
    %166 = arith.addf %160, %165 : vector<3x256xf32>
    %167 = vector.extract_strided_slice %131 {offsets = [0, 6], sizes = [3, 1], strides = [1, 1]} : vector<3x8xf32> to vector<3x1xf32>
    %168 = vector.extract_strided_slice %130 {offsets = [6, 0], sizes = [1, 256], strides = [1, 1]} : vector<8x256xf32> to vector<1x256xf32>
    %169 = vector.broadcast %167 : vector<3x1xf32> to vector<3x256xf32>
    %170 = vector.broadcast %168 : vector<1x256xf32> to vector<3x256xf32>
    %171 = arith.mulf %169, %170 : vector<3x256xf32>
    %172 = arith.addf %166, %171 : vector<3x256xf32>
    %173 = vector.extract_strided_slice %131 {offsets = [0, 7], sizes = [3, 1], strides = [1, 1]} : vector<3x8xf32> to vector<3x1xf32>
    %174 = vector.extract_strided_slice %130 {offsets = [7, 0], sizes = [1, 256], strides = [1, 1]} : vector<8x256xf32> to vector<1x256xf32>
    %175 = vector.broadcast %173 : vector<3x1xf32> to vector<3x256xf32>
    %176 = vector.broadcast %174 : vector<1x256xf32> to vector<3x256xf32>
    %177 = arith.mulf %175, %176 : vector<3x256xf32>
    %178 = arith.addf %172, %177 : vector<3x256xf32>
    %c0_12 = arith.constant 0 : index
    %c0_13 = arith.constant 0 : index
    %179 = vector.load %arg7[%c0_12, %c0_13] : memref<3x1xf32, #tpu.memory_space<vmem>>, vector<3x1xf32>
    %180 = vector.broadcast %179 : vector<3x1xf32> to vector<3x256xf32>
    %181 = arith.addf %178, %180 : vector<3x256xf32>
    %c0_14 = arith.constant 0 : index
    %c0_15 = arith.constant 0 : index
    %182 = vector.load %arg8[%c0_14, %c0_15] : memref<3x256xf32, #tpu.memory_space<vmem>>, vector<3x256xf32>
    tpu.vector_store %arg8[%c0_14, %c0_15], %181 {strides = array<i32>} : memref<3x256xf32, #tpu.memory_space<vmem>>, vector<3x256xf32>,
    return
  }
  func.func @transform_0(%arg0: i32) -> (i32, i32) {
    %c0_i32 = arith.constant 0 : i32
    %c0_i32_0 = arith.constant 0 : i32
    return %c0_i32, %arg0 : i32, i32
  }
  func.func @transform_1(%arg0: i32) -> (i32, i32) {
    %c0_i32 = arith.constant 0 : i32
    %c0_i32_0 = arith.constant 0 : i32
    %c0_i32_1 = arith.constant 0 : i32
    return %c0_i32, %c0_i32_0 : i32, i32
  }
  func.func @transform_2(%arg0: i32) -> (i32, i32) {
    %c0_i32 = arith.constant 0 : i32
    %c0_i32_0 = arith.constant 0 : i32
    %c0_i32_1 = arith.constant 0 : i32
    return %c0_i32, %c0_i32_0 : i32, i32
  }
  func.func @transform_3(%arg0: i32) -> (i32, i32) {
    %c0_i32 = arith.constant 0 : i32
    %c0_i32_0 = arith.constant 0 : i32
    %c0_i32_1 = arith.constant 0 : i32
    return %c0_i32, %c0_i32_0 : i32, i32
  }
  func.func @transform_4(%arg0: i32) -> (i32, i32) {
    %c0_i32 = arith.constant 0 : i32
    %c0_i32_0 = arith.constant 0 : i32
    %c0_i32_1 = arith.constant 0 : i32
    return %c0_i32, %c0_i32_0 : i32, i32
  }
  func.func @transform_5(%arg0: i32) -> (i32, i32) {
    %c0_i32 = arith.constant 0 : i32
    %c0_i32_0 = arith.constant 0 : i32
    %c0_i32_1 = arith.constant 0 : i32
    return %c0_i32, %c0_i32_0 : i32, i32
  }
  func.func @transform_6(%arg0: i32) -> (i32, i32) {
    %c0_i32 = arith.constant 0 : i32
    %c0_i32_0 = arith.constant 0 : i32
    %c0_i32_1 = arith.constant 0 : i32
    return %c0_i32, %c0_i32_0 : i32, i32
  }
  func.func @transform_7(%arg0: i32) -> (i32, i32) {
    %c0_i32 = arith.constant 0 : i32
    %c0_i32_0 = arith.constant 0 : i32
    return %c0_i32, %arg0 : i32, i32
  }
}

</mosaic_0001>

<llo_original>
// kernel: tpu_custom_call.1
$region0: #{tpu_custom_call.1}
  #allocation0 [shape = 'u32[]', space=smem, size = 0x4, offset = 0x4, fixed_abs, tag = 'smem constant byte address 0x4 - core index']
  #allocation1 [shape = 'u32[144,128]{1,0:T(1,128)}', space=vmem, size = 0x12000, scoped, tag = 'internal scratch']
  %s0 = inlined_call_operand.vmem [shape: f32[4,1024], index: 0, kind: input, shape index: {}]
  %s1 = inlined_call_operand.vmem [shape: f32[16,4], index: 1, kind: input, shape index: {}]
  %s2 = inlined_call_operand.vmem [shape: f32[16,1], index: 2, kind: input, shape index: {}]
  %s3 = inlined_call_operand.vmem [shape: f32[8,16], index: 3, kind: input, shape index: {}]
  %s4 = inlined_call_operand.vmem [shape: f32[8,1], index: 4, kind: input, shape index: {}]
  %s5 = inlined_call_operand.vmem [shape: f32[3,8], index: 5, kind: input, shape index: {}]
  %s6 = inlined_call_operand.vmem [shape: f32[3,1], index: 6, kind: input, shape index: {}]
  %s7 = inlined_call_operand.hbm [shape: f32[3,1024], index: 7, kind: output, shape index: {}]
  %s8 = sld [smem:[#allocation0]]
  $region61: #{tpu_custom_call.1} parent=0
    _
  %s10 = ssub.s32 1, %s8
  %s11 = scalar_select 0, %s10, %s8
  $region1: #{tpu_custom_call.1} parent=0
    #allocation2 [shape = 'u8[8192]{0}', space=vmem, size = 0x2000, scoped, tag = 'output window, operand 0']
    #allocation3 [shape = 's32[2]{0}', space=sflag, size = 0x8, scoped, tag = 'scoped memory for tpu_custom_call.1']
    %12 = vsyncpa [#allocation3], 0
    %s13 = scalar_lea.sflag [#allocation3], 1
    %14 = vsyncpa %s13, 0
    loop: start=0, step=1, limit=6
    $region2: #{tpu_custom_call.1} parent=1 // loop_pre_header
      _
    $region3: #{tpu_custom_call.1} parent=1 // loop_header
      %s16 = sphi 0, %s20
      %p17 = scmp.ge.s32.totalorder %s16, 6
      %s26 = sphi 0, %s28
      %s29 = sphi 0, %s26
      %s30 = sphi 0, %s29
      %s46 = sphi 0, %s30
      %s50 = sphi 0, %s50
      %s52 = sphi 0, %s50
      %s53 = sphi 0, %s52
      %s67 = sphi 0, %s53
      %s71 = sphi 0, %s71
      %s73 = sphi 0, %s71
      %s74 = sphi 0, %s73
      %s88 = sphi 0, %s74
      %s92 = sphi 0, %s92
      %s94 = sphi 0, %s92
      %s95 = sphi 0, %s94
      %s109 = sphi 0, %s95
      %s113 = sphi 0, %s113
      %s115 = sphi 0, %s113
      %s116 = sphi 0, %s115
      %s130 = sphi 0, %s116
      %s134 = sphi 0, %s134
      %s136 = sphi 0, %s134
      %s137 = sphi 0, %s136
      %s151 = sphi 0, %s137
      %s155 = sphi 0, %s155
      %s157 = sphi 0, %s155
      %s158 = sphi 0, %s157
      %s172 = sphi 0, %s158
      %s178 = sphi 0, %s180
      %s181 = sphi 0, %s178
      %s182 = sphi 0, %s181
      %s198 = sphi 0, %s182
    $region4: #{tpu_custom_call.1} parent=1 // loop_header_branch
      %19 = sbr.rel (%p17) target = $region8
    $region5: #{tpu_custom_call.1} parent=1 // loop_body
      %s21 = ssub.s32 %s16, 1
      %s22 = ssub.s32 %s16, 2
      %s23 = sadd.s32 %s16, 1
      %s24 = ssub.s32 %s16, %s23
      %p25 = scmp.eq.s32.totalorder %s24, 0
      %s27 = sadd.s32 %s26, 1
      %s28 = scalar_select %p25, %s26, %s27
      %p31 = pneg %p25
      %p32 = scmp.eq.s32.totalorder %s16, 3
      %p33 = por %p31, %p32
      %p34 = scmp.ne.s32.totalorder %s26, %s29
      %p35 = scmp.eq.s32.totalorder %s16, 0
      %p36 = por %p34, %p35
      %p37 = scmp.ne.s32.totalorder %s26, %s29
      %p38 = scmp.eq.s32.totalorder %s21, 3
      %p39 = por %p37, %p38
      %p40 = scmp.ne.s32.totalorder %s29, %s30
      %p41 = scmp.eq.s32.totalorder %s21, 0
      %p42 = por %p40, %p41
      %p43 = scmp.ne.s32.totalorder %s29, %s30
      %p44 = scmp.eq.s32.totalorder %s22, 3
      %p45 = por %p43, %p44
      %p47 = scmp.ne.s32.totalorder %s30, %s46
      %p48 = scmp.eq.s32.totalorder %s22, 0
      %p49 = por %p47, %p48
      %s51 = sadd.s32 %s50, 1
      %p54 = scmp.eq.s32.totalorder %s16, 3
      %p55 = scmp.ne.s32.totalorder %s50, %s52
      %p56 = scmp.eq.s32.totalorder %s16, 0
      %p57 = por %p55, %p56
      %p58 = scmp.ne.s32.totalorder %s50, %s52
      %p59 = scmp.eq.s32.totalorder %s21, 3
      %p60 = por %p58, %p59
      %p61 = scmp.ne.s32.totalorder %s52, %s53
      %p62 = scmp.eq.s32.totalorder %s21, 0
      %p63 = por %p61, %p62
      %p64 = scmp.ne.s32.totalorder %s52, %s53
      %p65 = scmp.eq.s32.totalorder %s22, 3
      %p66 = por %p64, %p65
      %p68 = scmp.ne.s32.totalorder %s53, %s67
      %p69 = scmp.eq.s32.totalorder %s22, 0
      %p70 = por %p68, %p69
      %s72 = sadd.s32 %s71, 1
      %p75 = scmp.eq.s32.totalorder %s16, 3
      %p76 = scmp.ne.s32.totalorder %s71, %s73
      %p77 = scmp.eq.s32.totalorder %s16, 0
      %p78 = por %p76, %p77
      %p79 = scmp.ne.s32.totalorder %s71, %s73
      %p80 = scmp.eq.s32.totalorder %s21, 3
      %p81 = por %p79, %p80
      %p82 = scmp.ne.s32.totalorder %s73, %s74
      %p83 = scmp.eq.s32.totalorder %s21, 0
      %p84 = por %p82, %p83
      %p85 = scmp.ne.s32.totalorder %s73, %s74
      %p86 = scmp.eq.s32.totalorder %s22, 3
      %p87 = por %p85, %p86
      %p89 = scmp.ne.s32.totalorder %s74, %s88
      %p90 = scmp.eq.s32.totalorder %s22, 0
      %p91 = por %p89, %p90
      %s93 = sadd.s32 %s92, 1
      %p96 = scmp.eq.s32.totalorder %s16, 3
      %p97 = scmp.ne.s32.totalorder %s92, %s94
      %p98 = scmp.eq.s32.totalorder %s16, 0
      %p99 = por %p97, %p98
      %p100 = scmp.ne.s32.totalorder %s92, %s94
      %p101 = scmp.eq.s32.totalorder %s21, 3
      %p102 = por %p100, %p101
      %p103 = scmp.ne.s32.totalorder %s94, %s95
      %p104 = scmp.eq.s32.totalorder %s21, 0
      %p105 = por %p103, %p104
      %p106 = scmp.ne.s32.totalorder %s94, %s95
      %p107 = scmp.eq.s32.totalorder %s22, 3
      %p108 = por %p106, %p107
      %p110 = scmp.ne.s32.totalorder %s95, %s109
      %p111 = scmp.eq.s32.totalorder %s22, 0
      %p112 = por %p110, %p111
      %s114 = sadd.s32 %s113, 1
      %p117 = scmp.eq.s32.totalorder %s16, 3
      %p118 = scmp.ne.s32.totalorder %s113, %s115
      %p119 = scmp.eq.s32.totalorder %s16, 0
      %p120 = por %p118, %p119
      %p121 = scmp.ne.s32.totalorder %s113, %s115
      %p122 = scmp.eq.s32.totalorder %s21, 3
      %p123 = por %p121, %p122
      %p124 = scmp.ne.s32.totalorder %s115, %s116
      %p125 = scmp.eq.s32.totalorder %s21, 0
      %p126 = por %p124, %p125
      %p127 = scmp.ne.s32.totalorder %s115, %s116
      %p128 = scmp.eq.s32.totalorder %s22, 3
      %p129 = por %p127, %p128
      %p131 = scmp.ne.s32.totalorder %s116, %s130
      %p132 = scmp.eq.s32.totalorder %s22, 0
      %p133 = por %p131, %p132
      %s135 = sadd.s32 %s134, 1
      %p138 = scmp.eq.s32.totalorder %s16, 3
      %p139 = scmp.ne.s32.totalorder %s134, %s136
      %p140 = scmp.eq.s32.totalorder %s16, 0
      %p141 = por %p139, %p140
      %p142 = scmp.ne.s32.totalorder %s134, %s136
      %p143 = scmp.eq.s32.totalorder %s21, 3
      %p144 = por %p142, %p143
      %p145 = scmp.ne.s32.totalorder %s136, %s137
      %p146 = scmp.eq.s32.totalorder %s21, 0
      %p147 = por %p145, %p146
      %p148 = scmp.ne.s32.totalorder %s136, %s137
      %p149 = scmp.eq.s32.totalorder %s22, 3
      %p150 = por %p148, %p149
      %p152 = scmp.ne.s32.totalorder %s137, %s151
      %p153 = scmp.eq.s32.totalorder %s22, 0
      %p154 = por %p152, %p153
      %s156 = sadd.s32 %s155, 1
      %p159 = scmp.eq.s32.totalorder %s16, 3
      %p160 = scmp.ne.s32.totalorder %s155, %s157
      %p161 = scmp.eq.s32.totalorder %s16, 0
      %p162 = por %p160, %p161
      %p163 = scmp.ne.s32.totalorder %s155, %s157
      %p164 = scmp.eq.s32.totalorder %s21, 3
      %p165 = por %p163, %p164
      %p166 = scmp.ne.s32.totalorder %s157, %s158
      %p167 = scmp.eq.s32.totalorder %s21, 0
      %p168 = por %p166, %p167
      %p169 = scmp.ne.s32.totalorder %s157, %s158
      %p170 = scmp.eq.s32.totalorder %s22, 3
      %p171 = por %p169, %p170
      %p173 = scmp.ne.s32.totalorder %s158, %s172
      %p174 = scmp.eq.s32.totalorder %s22, 0
      %p175 = por %p173, %p174
      %s176 = ssub.s32 %s16, %s23
      %p177 = scmp.eq.s32.totalorder %s176, 0
      %s179 = sadd.s32 %s178, 1
      %s180 = scalar_select %p177, %s178, %s179
      %p183 = pneg %p177
      %p184 = scmp.eq.s32.totalorder %s16, 3
      %p185 = por %p183, %p184
      %p186 = scmp.ne.s32.totalorder %s178, %s181
      %p187 = scmp.eq.s32.totalorder %s16, 0
      %p188 = por %p186, %p187
      %p189 = scmp.ne.s32.totalorder %s178, %s181
      %p190 = scmp.eq.s32.totalorder %s21, 3
      %p191 = por %p189, %p190
      %p192 = scmp.ne.s32.totalorder %s181, %s182
      %p193 = scmp.eq.s32.totalorder %s21, 0
      %p194 = por %p192, %p193
      %p195 = scmp.ne.s32.totalorder %s181, %s182
      %p196 = scmp.eq.s32.totalorder %s22, 3
      %p197 = por %p195, %p196
      %p199 = scmp.ne.s32.totalorder %s182, %s198
      %p200 = scmp.eq.s32.totalorder %s22, 0
      %p201 = por %p199, %p200
      %p202 = scmp.le.s32.totalorder 1, %s16
      %p203 = scmp.lt.s32.totalorder %s16, 5
      %p204 = pnand %p202, %p203
      %p205 = pneg %p204
      // Predicated region
      $region9: #{tpu_custom_call.1} parent=5 // pred_check
        _
      $region10: #{tpu_custom_call.1} parent=5 // pred_check_branch
        %207 = sbr.rel (%p204) target = $region12
      $region11: #{tpu_custom_call.1} parent=5 // pred_region
        %s208 = ssub.s32 %s16, 1
        // Predicated region
        $region13: #{tpu_custom_call.1} parent=11 // pred_check
          %p209 = pneg %p63
        $region14: #{tpu_custom_call.1} parent=11 // pred_check_branch
          %211 = sbr.rel (%p209) target = $region16
        $region15: #{tpu_custom_call.1} parent=11 // pred_region
          _
        $region16: #{tpu_custom_call.1} parent=11 // pred_fallthru
          _
        // Predicated region
        $region17: #{tpu_custom_call.1} parent=11 // pred_check
          %p212 = pneg %p84
        $region18: #{tpu_custom_call.1} parent=11 // pred_check_branch
          %214 = sbr.rel (%p212) target = $region20
        $region19: #{tpu_custom_call.1} parent=11 // pred_region
          _
        $region20: #{tpu_custom_call.1} parent=11 // pred_fallthru
          _
        // Predicated region
        $region21: #{tpu_custom_call.1} parent=11 // pred_check
          %p215 = pneg %p105
        $region22: #{tpu_custom_call.1} parent=11 // pred_check_branch
          %217 = sbr.rel (%p215) target = $region24
        $region23: #{tpu_custom_call.1} parent=11 // pred_region
          _
        $region24: #{tpu_custom_call.1} parent=11 // pred_fallthru
          _
        // Predicated region
        $region25: #{tpu_custom_call.1} parent=11 // pred_check
          %p218 = pneg %p126
        $region26: #{tpu_custom_call.1} parent=11 // pred_check_branch
          %220 = sbr.rel (%p218) target = $region28
        $region27: #{tpu_custom_call.1} parent=11 // pred_region
          _
        $region28: #{tpu_custom_call.1} parent=11 // pred_fallthru
          _
        // Predicated region
        $region29: #{tpu_custom_call.1} parent=11 // pred_check
          %p221 = pneg %p147
        $region30: #{tpu_custom_call.1} parent=11 // pred_check_branch
          %223 = sbr.rel (%p221) target = $region32
        $region31: #{tpu_custom_call.1} parent=11 // pred_region
          _
        $region32: #{tpu_custom_call.1} parent=11 // pred_fallthru
          _
        // Predicated region
        $region33: #{tpu_custom_call.1} parent=11 // pred_check
          %p224 = pneg %p168
        $region34: #{tpu_custom_call.1} parent=11 // pred_check_branch
          %226 = sbr.rel (%p224) target = $region36
        $region35: #{tpu_custom_call.1} parent=11 // pred_region
          _
        $region36: #{tpu_custom_call.1} parent=11 // pred_fallthru
          _
      $region12: #{tpu_custom_call.1} parent=5 // pred_fallthru
        _
      %p227 = scmp.lt.s32.totalorder %s16, 4
      // Predicated region
      $region37: #{tpu_custom_call.1} parent=5 // pred_check
        %p228 = pneg %p227
      $region38: #{tpu_custom_call.1} parent=5 // pred_check_branch
        %230 = sbr.rel (%p228) target = $region40
      $region39: #{tpu_custom_call.1} parent=5 // pred_region
        // Predicated region
        $region41: #{tpu_custom_call.1} parent=39 // pred_check
          %p231 = pneg %p36
        $region42: #{tpu_custom_call.1} parent=39 // pred_check_branch
          %233 = sbr.rel (%p231) target = $region44
        $region43: #{tpu_custom_call.1} parent=39 // pred_region
          %s234 = smul.u32 2, %s16
          %p235 = scmp.lt.s32.totalorder %s234, 7
          %s236 = scalar_select %p235, %s234, 7
          %s237 = smul.addr %s236, 4
          %s238 = scalar_lea.vmem %s0, %s237
          %s239 = smul.u32 2, %s16
        $region44: #{tpu_custom_call.1} parent=39 // pred_fallthru
          _
      $region40: #{tpu_custom_call.1} parent=5 // pred_fallthru
        _
      %p240 = scmp.le.s32.totalorder 1, %s16
      %p241 = scmp.lt.s32.totalorder %s16, 5
      %p242 = pnand %p240, %p241
      %p243 = pneg %p242
      // Predicated region
      $region45: #{tpu_custom_call.1} parent=5 // pred_check
        _
      $region46: #{tpu_custom_call.1} parent=5 // pred_check_branch
        %245 = sbr.rel (%p242) target = $region48
      $region47: #{tpu_custom_call.1} parent=5 // pred_region
        %s246 = ssub.s32 %s16, 1
        %s247 = smul.u32 2, %s21
        %p248 = scmp.lt.s32.totalorder %s247, 7
        %s249 = scalar_select %p248, %s247, 7
        %s250 = smul.addr %s249, 4
        %s251 = scalar_lea.vmem %s0, %s250
        %p252 = pneg %p42
        %p253 = pneg %p39
        %p254 = pneg %p63
        %p255 = pneg %p60
        %p256 = pneg %p84
        %p257 = pneg %p81
        %p258 = pneg %p105
        %p259 = pneg %p102
        %p260 = pneg %p126
        %p261 = pneg %p123
        %p262 = pneg %p147
        %p263 = pneg %p144
        %p264 = pneg %p168
        %p265 = pneg %p165
        %p266 = pneg %p194
        %p267 = pneg %p191
        %s268 = sand.u32 %s181, 1
        %s269 = scalar_lea.sflag [#allocation3], %s268
        %s270 = sand.u32 %s181, 1
        %s271 = smul.addr %s270, 8
        %s272 = scalar_lea.vmem [#allocation2], %s271
        %s273 = smul.u32 2, %s21
        %p274 = scmp.lt.s32.totalorder %s273, 7
        %s275 = scalar_select %p274, %s273, 7
        %s276 = smul.addr %s275, 4
        %s277 = scalar_lea.vmem %s0, %s276
        %s278 = smul.u32 2, %s21
        %s279 = smul.u32 2, %s21
        %v280 = vld [vmem:[%s277] sm:$0xff]
        %v281 = vld [vmem:[%s1] sm:$0xff]
        %v282 = vld [vmem:[%s1 + $0x8] sm:$0xff]
        %284 = vset.pattern.permute.xlu0 0
        %285 = vperm.xlu0 %284, %v281
        %v286 = vpop.permute.xlu0 %285
        %289 = vset.pattern.permute.xlu0 0
        %290 = vperm.xlu0 %289, %v282
        %v291 = vpop.permute.xlu0 %290
        %v294 = vlaneseq
        %v295 = vshrl.u32 %v294, 7
        %v296 = vsub.s32 0, %v295
        %v297 = vrot.slane %v280, %v296
        %v298 = vlaneseq
        %v299 = vshrl.u32 %v298, 7
        %v300 = vsub.s32 4, %v299
        %v301 = vrot.slane %v280, %v300
        %v304 = vlaneseq
        %v305 = vshrl.u32 %v304, 7
        %v306 = vsub.s32 0, %v305
        %v307 = vrot.slane %v297, %v306
        %v308 = vlaneseq
        %v309 = vshrl.u32 %v308, 7
        %v310 = vsub.s32 0, %v309
        %v311 = vrot.slane %v301, %v310
        %v312 = vmul.f32 %v286, %v307
        %v313 = vmul.f32 %v286, %v311
        %v314 = vmul.f32 %v291, %v307
        %v315 = vmul.f32 %v291, %v311
        %316 = vset.pattern.permute.xlu0 1
        %317 = vperm.xlu0 %316, %v281
        %v318 = vpop.permute.xlu0 %317
        %320 = vset.pattern.permute.xlu0 1
        %321 = vperm.xlu0 %320, %v282
        %v322 = vpop.permute.xlu0 %321
        %v324 = vlaneseq
        %v325 = vshrl.u32 %v324, 7
        %v326 = vsub.s32 1, %v325
        %v327 = vrot.slane %v280, %v326
        %v328 = vlaneseq
        %v329 = vshrl.u32 %v328, 7
        %v330 = vsub.s32 5, %v329
        %v331 = vrot.slane %v280, %v330
        %v334 = vlaneseq
        %v335 = vshrl.u32 %v334, 7
        %v336 = vsub.s32 1, %v335
        %v337 = vrot.slane %v327, %v336
        %v338 = vlaneseq
        %v339 = vshrl.u32 %v338, 7
        %v340 = vsub.s32 1, %v339
        %v341 = vrot.slane %v331, %v340
        %v342 = vmul.f32 %v318, %v337
        %v343 = vmul.f32 %v318, %v341
        %v344 = vmul.f32 %v322, %v337
        %v345 = vmul.f32 %v322, %v341
        %v346 = vadd.f32 %v312, %v342
        %v347 = vadd.f32 %v313, %v343
        %v348 = vadd.f32 %v314, %v344
        %v349 = vadd.f32 %v315, %v345
        %350 = vset.pattern.permute.xlu0 2
        %351 = vperm.xlu0 %350, %v281
        %v352 = vpop.permute.xlu0 %351
        %354 = vset.pattern.permute.xlu0 2
        %355 = vperm.xlu0 %354, %v282
        %v356 = vpop.permute.xlu0 %355
        %v358 = vlaneseq
        %v359 = vshrl.u32 %v358, 7
        %v360 = vsub.s32 2, %v359
        %v361 = vrot.slane %v280, %v360
        %v362 = vlaneseq
        %v363 = vshrl.u32 %v362, 7
        %v364 = vsub.s32 6, %v363
        %v365 = vrot.slane %v280, %v364
        %v368 = vlaneseq
        %v369 = vshrl.u32 %v368, 7
        %v370 = vsub.s32 2, %v369
        %v371 = vrot.slane %v361, %v370
        %v372 = vlaneseq
        %v373 = vshrl.u32 %v372, 7
        %v374 = vsub.s32 2, %v373
        %v375 = vrot.slane %v365, %v374
        %v376 = vmul.f32 %v352, %v371
        %v377 = vmul.f32 %v352, %v375
        %v378 = vmul.f32 %v356, %v371
        %v379 = vmul.f32 %v356, %v375
        %v380 = vadd.f32 %v346, %v376
        %v381 = vadd.f32 %v347, %v377
        %v382 = vadd.f32 %v348, %v378
        %v383 = vadd.f32 %v349, %v379
        %384 = vset.pattern.permute.xlu0 3
        %385 = vperm.xlu0 %384, %v281
        %v386 = vpop.permute.xlu0 %385
        %388 = vset.pattern.permute.xlu0 3
        %389 = vperm.xlu0 %388, %v282
        %v390 = vpop.permute.xlu0 %389
        %v392 = vlaneseq
        %v393 = vshrl.u32 %v392, 7
        %v394 = vsub.s32 3, %v393
        %v395 = vrot.slane %v280, %v394
        %v396 = vlaneseq
        %v397 = vshrl.u32 %v396, 7
        %v398 = vsub.s32 7, %v397
        %v399 = vrot.slane %v280, %v398
        %v402 = vlaneseq
        %v403 = vshrl.u32 %v402, 7
        %v404 = vsub.s32 3, %v403
        %v405 = vrot.slane %v395, %v404
        %v406 = vlaneseq
        %v407 = vshrl.u32 %v406, 7
        %v408 = vsub.s32 3, %v407
        %v409 = vrot.slane %v399, %v408
        %v410 = vmul.f32 %v386, %v405
        %v411 = vmul.f32 %v386, %v409
        %v412 = vmul.f32 %v390, %v405
        %v413 = vmul.f32 %v390, %v409
        %v414 = vadd.f32 %v380, %v410
        %v415 = vadd.f32 %v381, %v411
        %v416 = vadd.f32 %v382, %v412
        %v417 = vadd.f32 %v383, %v413
        %v418 = vld [vmem:[%s2] sm:$0xff]
        %v419 = vld [vmem:[%s2 + $0x8] sm:$0xff]
        %421 = vset.pattern.permute.xlu0 0
        %422 = vperm.xlu0 %421, %v418
        %v423 = vpop.permute.xlu0 %422
        %426 = vset.pattern.permute.xlu0 0
        %427 = vperm.xlu0 %426, %v419
        %v428 = vpop.permute.xlu0 %427
        %v430 = vadd.f32 %v414, %v423
        %v431 = vadd.f32 %v415, %v423
        %v432 = vadd.f32 %v416, %v428
        %v433 = vadd.f32 %v417, %v428
        %v434 = vmax.f32 %v430, 0.0
        %v435 = vmax.f32 %v431, 0.0
        %v436 = vmax.f32 %v432, 0.0
        %v437 = vmax.f32 %v433, 0.0
        %v438 = vld [vmem:[%s3] sm:$0xff]
        %440 = vset.pattern.permute.xlu0 0
        %441 = vperm.xlu0 %440, %v438
        %v442 = vpop.permute.xlu0 %441
        %v444 = vlaneseq
        %v445 = vshrl.u32 %v444, 7
        %v446 = vsub.s32 0, %v445
        %v447 = vrot.slane %v434, %v446
        %v448 = vlaneseq
        %v449 = vshrl.u32 %v448, 7
        %v450 = vsub.s32 0, %v449
        %v451 = vrot.slane %v435, %v450
        %v452 = vmul.f32 %v442, %v447
        %v453 = vmul.f32 %v442, %v451
        %454 = vset.pattern.permute.xlu0 1
        %455 = vperm.xlu0 %454, %v438
        %v456 = vpop.permute.xlu0 %455
        %v458 = vlaneseq
        %v459 = vshrl.u32 %v458, 7
        %v460 = vsub.s32 1, %v459
        %v461 = vrot.slane %v434, %v460
        %v462 = vlaneseq
        %v463 = vshrl.u32 %v462, 7
        %v464 = vsub.s32 1, %v463
        %v465 = vrot.slane %v435, %v464
        %v466 = vmul.f32 %v456, %v461
        %v467 = vmul.f32 %v456, %v465
        %v468 = vadd.f32 %v452, %v466
        %v469 = vadd.f32 %v453, %v467
        %470 = vset.pattern.permute.xlu0 2
        %471 = vperm.xlu0 %470, %v438
        %v472 = vpop.permute.xlu0 %471
        %v474 = vlaneseq
        %v475 = vshrl.u32 %v474, 7
        %v476 = vsub.s32 2, %v475
        %v477 = vrot.slane %v434, %v476
        %v478 = vlaneseq
        %v479 = vshrl.u32 %v478, 7
        %v480 = vsub.s32 2, %v479
        %v481 = vrot.slane %v435, %v480
        %v482 = vmul.f32 %v472, %v477
        %v483 = vmul.f32 %v472, %v481
        %v484 = vadd.f32 %v468, %v482
        %v485 = vadd.f32 %v469, %v483
        %486 = vset.pattern.permute.xlu0 3
        %487 = vperm.xlu0 %486, %v438
        %v488 = vpop.permute.xlu0 %487
        %v490 = vlaneseq
        %v491 = vshrl.u32 %v490, 7
        %v492 = vsub.s32 3, %v491
        %v493 = vrot.slane %v434, %v492
        %v494 = vlaneseq
        %v495 = vshrl.u32 %v494, 7
        %v496 = vsub.s32 3, %v495
        %v497 = vrot.slane %v435, %v496
        %v498 = vmul.f32 %v488, %v493
        %v499 = vmul.f32 %v488, %v497
        %v500 = vadd.f32 %v484, %v498
        %v501 = vadd.f32 %v485, %v499
        %502 = vset.pattern.permute.xlu0 4
        %503 = vperm.xlu0 %502, %v438
        %v504 = vpop.permute.xlu0 %503
        %v506 = vlaneseq
        %v507 = vshrl.u32 %v506, 7
        %v508 = vsub.s32 4, %v507
        %v509 = vrot.slane %v434, %v508
        %v510 = vlaneseq
        %v511 = vshrl.u32 %v510, 7
        %v512 = vsub.s32 4, %v511
        %v513 = vrot.slane %v435, %v512
        %v514 = vmul.f32 %v504, %v509
        %v515 = vmul.f32 %v504, %v513
        %v516 = vadd.f32 %v500, %v514
        %v517 = vadd.f32 %v501, %v515
        %518 = vset.pattern.permute.xlu0 5
        %519 = vperm.xlu0 %518, %v438
        %v520 = vpop.permute.xlu0 %519
        %v522 = vlaneseq
        %v523 = vshrl.u32 %v522, 7
        %v524 = vsub.s32 5, %v523
        %v525 = vrot.slane %v434, %v524
        %v526 = vlaneseq
        %v527 = vshrl.u32 %v526, 7
        %v528 = vsub.s32 5, %v527
        %v529 = vrot.slane %v435, %v528
        %v530 = vmul.f32 %v520, %v525
        %v531 = vmul.f32 %v520, %v529
        %v532 = vadd.f32 %v516, %v530
        %v533 = vadd.f32 %v517, %v531
        %534 = vset.pattern.permute.xlu0 6
        %535 = vperm.xlu0 %534, %v438
        %v536 = vpop.permute.xlu0 %535
        %v538 = vlaneseq
        %v539 = vshrl.u32 %v538, 7
        %v540 = vsub.s32 6, %v539
        %v541 = vrot.slane %v434, %v540
        %v542 = vlaneseq
        %v543 = vshrl.u32 %v542, 7
        %v544 = vsub.s32 6, %v543
        %v545 = vrot.slane %v435, %v544
        %v546 = vmul.f32 %v536, %v541
        %v547 = vmul.f32 %v536, %v545
        %v548 = vadd.f32 %v532, %v546
        %v549 = vadd.f32 %v533, %v547
        %550 = vset.pattern.permute.xlu0 7
        %551 = vperm.xlu0 %550, %v438
        %v552 = vpop.permute.xlu0 %551
        %v554 = vlaneseq
        %v555 = vshrl.u32 %v554, 7
        %v556 = vsub.s32 7, %v555
        %v557 = vrot.slane %v434, %v556
        %v558 = vlaneseq
        %v559 = vshrl.u32 %v558, 7
        %v560 = vsub.s32 7, %v559
        %v561 = vrot.slane %v435, %v560
        %v562 = vmul.f32 %v552, %v557
        %v563 = vmul.f32 %v552, %v561
        %v564 = vadd.f32 %v548, %v562
        %v565 = vadd.f32 %v549, %v563
        %566 = vset.pattern.permute.xlu0 8
        %567 = vperm.xlu0 %566, %v438
        %v568 = vpop.permute.xlu0 %567
        %v570 = vlaneseq
        %v571 = vshrl.u32 %v570, 7
        %v572 = vsub.s32 0, %v571
        %v573 = vrot.slane %v436, %v572
        %v574 = vlaneseq
        %v575 = vshrl.u32 %v574, 7
        %v576 = vsub.s32 0, %v575
        %v577 = vrot.slane %v437, %v576
        %v578 = vmul.f32 %v568, %v573
        %v579 = vmul.f32 %v568, %v577
        %v580 = vadd.f32 %v564, %v578
        %v581 = vadd.f32 %v565, %v579
        %582 = vset.pattern.permute.xlu0 9
        %583 = vperm.xlu0 %582, %v438
        %v584 = vpop.permute.xlu0 %583
        %v586 = vlaneseq
        %v587 = vshrl.u32 %v586, 7
        %v588 = vsub.s32 1, %v587
        %v589 = vrot.slane %v436, %v588
        %v590 = vlaneseq
        %v591 = vshrl.u32 %v590, 7
        %v592 = vsub.s32 1, %v591
        %v593 = vrot.slane %v437, %v592
        %v594 = vmul.f32 %v584, %v589
        %v595 = vmul.f32 %v584, %v593
        %v596 = vadd.f32 %v580, %v594
        %v597 = vadd.f32 %v581, %v595
        %598 = vset.pattern.permute.xlu0 10
        %599 = vperm.xlu0 %598, %v438
        %v600 = vpop.permute.xlu0 %599
        %v602 = vlaneseq
        %v603 = vshrl.u32 %v602, 7
        %v604 = vsub.s32 2, %v603
        %v605 = vrot.slane %v436, %v604
        %v606 = vlaneseq
        %v607 = vshrl.u32 %v606, 7
        %v608 = vsub.s32 2, %v607
        %v609 = vrot.slane %v437, %v608
        %v610 = vmul.f32 %v600, %v605
        %v611 = vmul.f32 %v600, %v609
        %v612 = vadd.f32 %v596, %v610
        %v613 = vadd.f32 %v597, %v611
        %614 = vset.pattern.permute.xlu0 11
        %615 = vperm.xlu0 %614, %v438
        %v616 = vpop.permute.xlu0 %615
        %v618 = vlaneseq
        %v619 = vshrl.u32 %v618, 7
        %v620 = vsub.s32 3, %v619
        %v621 = vrot.slane %v436, %v620
        %v622 = vlaneseq
        %v623 = vshrl.u32 %v622, 7
        %v624 = vsub.s32 3, %v623
        %v625 = vrot.slane %v437, %v624
        %v626 = vmul.f32 %v616, %v621
        %v627 = vmul.f32 %v616, %v625
        %v628 = vadd.f32 %v612, %v626
        %v629 = vadd.f32 %v613, %v627
        %630 = vset.pattern.permute.xlu0 12
        %631 = vperm.xlu0 %630, %v438
        %v632 = vpop.permute.xlu0 %631
        %v634 = vlaneseq
        %v635 = vshrl.u32 %v634, 7
        %v636 = vsub.s32 4, %v635
        %v637 = vrot.slane %v436, %v636
        %v638 = vlaneseq
        %v639 = vshrl.u32 %v638, 7
        %v640 = vsub.s32 4, %v639
        %v641 = vrot.slane %v437, %v640
        %v642 = vmul.f32 %v632, %v637
        %v643 = vmul.f32 %v632, %v641
        %v644 = vadd.f32 %v628, %v642
        %v645 = vadd.f32 %v629, %v643
        %646 = vset.pattern.permute.xlu0 13
        %647 = vperm.xlu0 %646, %v438
        %v648 = vpop.permute.xlu0 %647
        %v650 = vlaneseq
        %v651 = vshrl.u32 %v650, 7
        %v652 = vsub.s32 5, %v651
        %v653 = vrot.slane %v436, %v652
        %v654 = vlaneseq
        %v655 = vshrl.u32 %v654, 7
        %v656 = vsub.s32 5, %v655
        %v657 = vrot.slane %v437, %v656
        %v658 = vmul.f32 %v648, %v653
        %v659 = vmul.f32 %v648, %v657
        %v660 = vadd.f32 %v644, %v658
        %v661 = vadd.f32 %v645, %v659
        %662 = vset.pattern.permute.xlu0 14
        %663 = vperm.xlu0 %662, %v438
        %v664 = vpop.permute.xlu0 %663
        %v666 = vlaneseq
        %v667 = vshrl.u32 %v666, 7
        %v668 = vsub.s32 6, %v667
        %v669 = vrot.slane %v436, %v668
        %v670 = vlaneseq
        %v671 = vshrl.u32 %v670, 7
        %v672 = vsub.s32 6, %v671
        %v673 = vrot.slane %v437, %v672
        %v674 = vmul.f32 %v664, %v669
        %v675 = vmul.f32 %v664, %v673
        %v676 = vadd.f32 %v660, %v674
        %v677 = vadd.f32 %v661, %v675
        %678 = vset.pattern.permute.xlu0 15
        %679 = vperm.xlu0 %678, %v438
        %v680 = vpop.permute.xlu0 %679
        %v682 = vlaneseq
        %v683 = vshrl.u32 %v682, 7
        %v684 = vsub.s32 7, %v683
        %v685 = vrot.slane %v436, %v684
        %v686 = vlaneseq
        %v687 = vshrl.u32 %v686, 7
        %v688 = vsub.s32 7, %v687
        %v689 = vrot.slane %v437, %v688
        %v690 = vmul.f32 %v680, %v685
        %v691 = vmul.f32 %v680, %v689
        %v692 = vadd.f32 %v676, %v690
        %v693 = vadd.f32 %v677, %v691
        %v694 = vld [vmem:[%s4] sm:$0xff]
        %696 = vset.pattern.permute.xlu0 0
        %697 = vperm.xlu0 %696, %v694
        %v698 = vpop.permute.xlu0 %697
        %v700 = vadd.f32 %v692, %v698
        %v701 = vadd.f32 %v693, %v698
        %v702 = vmax.f32 %v700, 0.0
        %v703 = vmax.f32 %v701, 0.0
        %v704 = vld [vmem:[%s5] sm:$0x7]
        %706 = vset.pattern.permute.xlu0 0
        %707 = vperm.xlu0 %706, %v704
        %v708 = vpop.permute.xlu0 %707
        %v710 = vlaneseq
        %v711 = vshrl.u32 %v710, 7
        %v712 = vsub.s32 0, %v711
        %v713 = vrot.slane %v702, %v712
        %v714 = vlaneseq
        %v715 = vshrl.u32 %v714, 7
        %v716 = vsub.s32 0, %v715
        %v717 = vrot.slane %v703, %v716
        %v718 = vmul.f32 %v708, %v713
        %v719 = vmul.f32 %v708, %v717
        %720 = vset.pattern.permute.xlu0 1
        %721 = vperm.xlu0 %720, %v704
        %v722 = vpop.permute.xlu0 %721
        %v724 = vlaneseq
        %v725 = vshrl.u32 %v724, 7
        %v726 = vsub.s32 1, %v725
        %v727 = vrot.slane %v702, %v726
        %v728 = vlaneseq
        %v729 = vshrl.u32 %v728, 7
        %v730 = vsub.s32 1, %v729
        %v731 = vrot.slane %v703, %v730
        %v732 = vmul.f32 %v722, %v727
        %v733 = vmul.f32 %v722, %v731
        %v734 = vadd.f32 %v718, %v732
        %v735 = vadd.f32 %v719, %v733
        %736 = vset.pattern.permute.xlu0 2
        %737 = vperm.xlu0 %736, %v704
        %v738 = vpop.permute.xlu0 %737
        %v740 = vlaneseq
        %v741 = vshrl.u32 %v740, 7
        %v742 = vsub.s32 2, %v741
        %v743 = vrot.slane %v702, %v742
        %v744 = vlaneseq
        %v745 = vshrl.u32 %v744, 7
        %v746 = vsub.s32 2, %v745
        %v747 = vrot.slane %v703, %v746
        %v748 = vmul.f32 %v738, %v743
        %v749 = vmul.f32 %v738, %v747
        %v750 = vadd.f32 %v734, %v748
        %v751 = vadd.f32 %v735, %v749
        %752 = vset.pattern.permute.xlu0 3
        %753 = vperm.xlu0 %752, %v704
        %v754 = vpop.permute.xlu0 %753
        %v756 = vlaneseq
        %v757 = vshrl.u32 %v756, 7
        %v758 = vsub.s32 3, %v757
        %v759 = vrot.slane %v702, %v758
        %v760 = vlaneseq
        %v761 = vshrl.u32 %v760, 7
        %v762 = vsub.s32 3, %v761
        %v763 = vrot.slane %v703, %v762
        %v764 = vmul.f32 %v754, %v759
        %v765 = vmul.f32 %v754, %v763
        %v766 = vadd.f32 %v750, %v764
        %v767 = vadd.f32 %v751, %v765
        %768 = vset.pattern.permute.xlu0 4
        %769 = vperm.xlu0 %768, %v704
        %v770 = vpop.permute.xlu0 %769
        %v772 = vlaneseq
        %v773 = vshrl.u32 %v772, 7
        %v774 = vsub.s32 4, %v773
        %v775 = vrot.slane %v702, %v774
        %v776 = vlaneseq
        %v777 = vshrl.u32 %v776, 7
        %v778 = vsub.s32 4, %v777
        %v779 = vrot.slane %v703, %v778
        %v780 = vmul.f32 %v770, %v775
        %v781 = vmul.f32 %v770, %v779
        %v782 = vadd.f32 %v766, %v780
        %v783 = vadd.f32 %v767, %v781
        %784 = vset.pattern.permute.xlu0 5
        %785 = vperm.xlu0 %784, %v704
        %v786 = vpop.permute.xlu0 %785
        %v788 = vlaneseq
        %v789 = vshrl.u32 %v788, 7
        %v790 = vsub.s32 5, %v789
        %v791 = vrot.slane %v702, %v790
        %v792 = vlaneseq
        %v793 = vshrl.u32 %v792, 7
        %v794 = vsub.s32 5, %v793
        %v795 = vrot.slane %v703, %v794
        %v796 = vmul.f32 %v786, %v791
        %v797 = vmul.f32 %v786, %v795
        %v798 = vadd.f32 %v782, %v796
        %v799 = vadd.f32 %v783, %v797
        %800 = vset.pattern.permute.xlu0 6
        %801 = vperm.xlu0 %800, %v704
        %v802 = vpop.permute.xlu0 %801
        %v804 = vlaneseq
        %v805 = vshrl.u32 %v804, 7
        %v806 = vsub.s32 6, %v805
        %v807 = vrot.slane %v702, %v806
        %v808 = vlaneseq
        %v809 = vshrl.u32 %v808, 7
        %v810 = vsub.s32 6, %v809
        %v811 = vrot.slane %v703, %v810
        %v812 = vmul.f32 %v802, %v807
        %v813 = vmul.f32 %v802, %v811
        %v814 = vadd.f32 %v798, %v812
        %v815 = vadd.f32 %v799, %v813
        %816 = vset.pattern.permute.xlu0 7
        %817 = vperm.xlu0 %816, %v704
        %v818 = vpop.permute.xlu0 %817
        %v820 = vlaneseq
        %v821 = vshrl.u32 %v820, 7
        %v822 = vsub.s32 7, %v821
        %v823 = vrot.slane %v702, %v822
        %v824 = vlaneseq
        %v825 = vshrl.u32 %v824, 7
        %v826 = vsub.s32 7, %v825
        %v827 = vrot.slane %v703, %v826
        %v828 = vmul.f32 %v818, %v823
        %v829 = vmul.f32 %v818, %v827
        %v830 = vadd.f32 %v814, %v828
        %v831 = vadd.f32 %v815, %v829
        %v832 = vld [vmem:[%s6] sm:$0x7]
        %834 = vset.pattern.permute.xlu0 0
        %835 = vperm.xlu0 %834, %v832
        %v836 = vpop.permute.xlu0 %835
        %v838 = vadd.f32 %v830, %v836
        %v839 = vadd.f32 %v831, %v836
        %v842 = vcombine.low %v838, %v839
        %844 = vst [vmem:[%s272] sm:$0x77] %v842
        %s845 = sand.u32 %s181, 1
        %s846 = scalar_lea.sflag [#allocation3], %s845
        %s847 = sand.u32 %s181, 1
        %s848 = smul.addr %s847, 8
        %s849 = scalar_lea.vmem [#allocation2], %s848
        // Predicated region
        $region49: #{tpu_custom_call.1} parent=47 // pred_check
          %p850 = pneg %p191
        $region50: #{tpu_custom_call.1} parent=47 // pred_check_branch
          %852 = sbr.rel (%p850) target = $region52
        $region51: #{tpu_custom_call.1} parent=47 // pred_region
          %s853 = smul.u32 2, %s21
          %s855 = ssub.s32 128, 128
          %856 = vsyncadd %s846, %s855
          %s857 = smul.addr %s853, 64
          %s858 = scalar_lea.hbm %s7, %s857
          %s860 = sshll.u32 %s849, 4
          %s861 = int_to_ptr.vmem [resolvable:$true] %s860
          %863 = dma.vmem_to_hbm [thread:$0]  %s861, 128, %s858, %s846
        $region52: #{tpu_custom_call.1} parent=47 // pred_fallthru
          _
      $region48: #{tpu_custom_call.1} parent=5 // pred_fallthru
        _
      %p864 = scmp.le.s32.totalorder 2, %s16
      // Predicated region
      $region53: #{tpu_custom_call.1} parent=5 // pred_check
        %p865 = pneg %p864
      $region54: #{tpu_custom_call.1} parent=5 // pred_check_branch
        %867 = sbr.rel (%p865) target = $region56
      $region55: #{tpu_custom_call.1} parent=5 // pred_region
        %s868 = ssub.s32 %s16, 2
        // Predicated region
        $region57: #{tpu_custom_call.1} parent=55 // pred_check
          %p869 = pneg %p197
        $region58: #{tpu_custom_call.1} parent=55 // pred_check_branch
          %871 = sbr.rel (%p869) target = $region60
        $region59: #{tpu_custom_call.1} parent=55 // pred_region
          %s872 = sand.u32 %s182, 1
          %s873 = scalar_lea.sflag [#allocation3], %s872
          %s874 = sand.u32 %s182, 1
          %s875 = smul.addr %s874, 8
          %s876 = scalar_lea.vmem [#allocation2], %s875
          %877 = dma.done %s873, 128
        $region60: #{tpu_custom_call.1} parent=55 // pred_fallthru
          _
      $region56: #{tpu_custom_call.1} parent=5 // pred_fallthru
        _
    $region6: #{tpu_custom_call.1} parent=1 // loop_footer
      %s20 = sadd.s32 1, %s16
    $region7: #{tpu_custom_call.1} parent=1 // loop_footer_branch
      %15 = sbr.rel target = $region3
    $region8: #{tpu_custom_call.1} parent=1 // loop_exit
      _
    %878 = vsyncpa [#allocation3], 1
    %s879 = scalar_lea.sflag [#allocation3], 1
    %880 = vsyncpa %s879, 1

</llo_original>
